<compile_context>
chip_gen: v5e
topology: v5e:2x2
jax: 0.10.0
libtpu: 0.0.40
codegen_flags: <defaults>
</compile_context>

<pallas_src>
import functools

import jax
import jax.numpy as jnp
from jax import lax
from jax.experimental import pallas as pl
from jax.experimental.pallas import tpu as pltpu

EPS = 1e-8


def _excite_kernel(p_ref, w_ref, ramp_ref, *rest, P, L, has_noise):
    if has_noise:
        noise_ref, e_ref = rest
    else:
        (e_ref,) = rest

    f32 = jnp.float32
    p = p_ref[...].astype(f32)          # (BT, N)
    w_expand = w_ref[...]               # (N, L)  resident constant
    w1 = ramp_ref[...]                  # (1, L)  = (j mod P) / P
    w0 = 1.0 - w1

    # ---- frame -> sample expansion (single MXU matmul): p_n[:, j] = p[:, j//P]
    p_n = jnp.dot(p, w_expand, preferred_element_type=f32)      # (BT, L)
    voiced = p_n >= 1.0                 # == (clip(p, 0, 1) == 1) expanded
    v_n = voiced.astype(f32)

    # single small lane-index row; every mask below is derived from it
    col = lax.broadcasted_iota(jnp.int32, (1, L), 1)

    # ---- next frame's pitch (replication pad): roll left by P, hold last frame
    if L > P:
        p_nx = pltpu.roll(p_n, shift=L - P, axis=1)   # p_nx[j] = p_n[(j+P) mod L]
        p_nx = jnp.where(col >= L - P, p_n, p_nx)
    else:
        p_nx = p_n
    # voiced -> unvoiced transition: hold the current frame's pitch
    # (sample-level equivalent of torch's  p[tmp_mask] = roll(p,1)[tmp_mask])
    p_next = jnp.where(voiced & (p_nx <= 0.0), p_n, p_nx)

    # ---- linear interpolation + voiced mask
    p_s = (p_n * w0 + p_next * w1) * v_n

    # q = 1/p with 1/0 -> 0 (nan_to_num(posinf=0))
    q = jnp.where(p_s != 0.0, 1.0 / p_s, 0.0)

    # wrap masks for the scans, built once and reused by both scans
    ge_masks = []
    d = 1
    while d < L:
        ge_masks.append(col >= d)
        d *= 2

    # ---- inclusive cumsum along samples (Hillis-Steele, masked circular rolls)
    s = q
    d, i = 1, 0
    while d < L:
        rolled = pltpu.roll(s, shift=d, axis=1)
        s = s + jnp.where(ge_masks[i], rolled, 0.0)
        d, i = d * 2, i + 1

    # ---- bias = cummax(s * ~mask)
    t = s * (1.0 - v_n)
    d, i = 1, 0
    while d < L:
        rolled = pltpu.roll(t, shift=d, axis=1)
        t = jnp.where(ge_masks[i], jnp.maximum(t, rolled), t)
        d, i = d * 2, i + 1

    # ---- pulse positions
    s2 = jnp.ceil(s - t - EPS)
    if L > 1:
        prev = jnp.where(ge_masks[0], pltpu.roll(s2, shift=1, axis=1), 0.0)
    else:
        prev = jnp.zeros_like(s2)
    pulse = (s2 - prev) >= 1.0

    e = jnp.where(pulse, jnp.sqrt(p_s), 0.0)
    if has_noise:
        e = jnp.where(voiced, e, noise_ref[...].astype(f32))
    e_ref[...] = e.astype(e_ref.dtype)


def _round_up(x, m):
    return (x + m - 1) // m * m


def excitation_generation(p, frame_period, unvoiced_region="gauss", key=None,
                          block_b=128):
    """p: (B, N) float32 pitch period in samples (<= 0 => unvoiced).
    Returns e: (B, N * frame_period) float32 excitation."""
    assert frame_period >= 1
    assert unvoiced_region in ("gauss", "zeros")
    p = jnp.asarray(p, jnp.float32)
    B, N = p.shape
    P = int(frame_period)
    L = N * P

    # rows per grid step: sublane-aligned, capped by block_b; pad batch to fit
    block_rows = min(_round_up(B, 8), _round_up(block_b, 8))
    B_pad = _round_up(B, block_rows)

    has_noise = unvoiced_region == "gauss"
    if has_noise:
        assert key is not None
        noise = jax.random.normal(key, (B, L), dtype=jnp.float32)

    if B_pad != B:
        p = jnp.pad(p, ((0, B_pad - B), (0, 0)))
        if has_noise:
            noise = jnp.pad(noise, ((0, B_pad - B), (0, 0)))

    # constants built once; their blocks stay resident in VMEM across grid
    # steps (index_map always returns block (0, 0) -> no re-DMA, no rebuild).
    frame_of_sample = jnp.arange(L, dtype=jnp.int32) // P                   # (L,)
    w_expand = (jnp.arange(N, dtype=jnp.int32)[:, None]
                == frame_of_sample[None, :]).astype(jnp.float32)            # (N, L)
    ramp = ((jnp.arange(L, dtype=jnp.int32) % P).astype(jnp.float32)
            / float(P))[None, :]                                            # (1, L)

    inputs = [p, w_expand, ramp]
    in_specs = [
        pl.BlockSpec((block_rows, N), lambda i: (i, 0)),
        pl.BlockSpec((N, L), lambda i: (0, 0)),   # resident constant
        pl.BlockSpec((1, L), lambda i: (0, 0)),   # resident constant
    ]
    if has_noise:
        inputs.append(noise)
        in_specs.append(pl.BlockSpec((block_rows, L), lambda i: (i, 0)))

    kernel = functools.partial(_excite_kernel, P=P, L=L, has_noise=has_noise)

    # explicit scoped-VMEM budget: double-buffered (block_rows, L) I/O tiles,
    # resident constants, plus headroom for in-kernel scan temporaries.
    est = 4 * (2 * block_rows * N
               + (4 if has_noise else 2) * block_rows * L
               + (N + 1) * L
               + 8 * block_rows * L)
    vmem_limit = int(min(max(est, 32 * 1024 * 1024), 112 * 1024 * 1024))

    e = pl.pallas_call(
        kernel,
        out_shape=jax.ShapeDtypeStruct((B_pad, L), jnp.float32),
        grid_spec=pltpu.PrefetchScalarGridSpec(
            num_scalar_prefetch=0,
            grid=(B_pad // block_rows,),
            in_specs=in_specs,
            out_specs=pl.BlockSpec((block_rows, L), lambda i: (i, 0)),
        ),
        compiler_params=pltpu.CompilerParams(
            dimension_semantics=("parallel",),
            vmem_limit_bytes=vmem_limit,
        ),
    )(*inputs)
    return e[:B] if B_pad != B else e


def _reference(p, P, noise, unvoiced_region):
    """Pure-JAX transcription of the torch module, for checking only."""
    p = jnp.asarray(p, jnp.float32)
    B, N = p.shape
    L = N * P
    base = jnp.clip(p, 0.0, 1.0)
    mask = jnp.repeat(base == 1.0, P, axis=-1)                        # (B, L)
    tmp = jnp.concatenate([jnp.zeros((B, 1), p.dtype), base], axis=-1)
    fix = (tmp[:, 1:] - tmp[:, :-1]) == -1.0
    p_fix = jnp.where(fix, jnp.roll(p, 1, axis=-1), p)
    p_pad = jnp.concatenate([p_fix, p_fix[:, -1:]], axis=-1)          # (B, N+1)
    w = jnp.arange(P, dtype=p.dtype) / P
    ps = p_pad[:, :-1, None] * (1.0 - w) + p_pad[:, 1:, None] * w     # (B, N, P)
    ps = ps.reshape(B, L) * mask
    q = jnp.where(ps != 0.0, 1.0 / ps, 0.0)
    s = jnp.cumsum(q, axis=-1)
    bias = lax.cummax(s * (~mask).astype(s.dtype), axis=1)
    s2 = jnp.ceil(s - bias - EPS)
    prev = jnp.concatenate([jnp.zeros((B, 1), s2.dtype), s2[:, :-1]], axis=-1)
    pulse = (s2 - prev) >= 1.0
    e = jnp.where(pulse, jnp.sqrt(ps), 0.0)
    if unvoiced_region == "gauss":
        e = jnp.where(mask, e, noise)
    return e


if __name__ == "__main__":
    P = 8            # frame_period
    B, N = 8, 16     # batch of pitch tracks, frames per track  -> L = 128
    L = N * P

    key = jax.random.PRNGKey(0)
    k_pitch, k_voiced, k_noise = jax.random.split(key, 3)
    periods = jax.random.uniform(k_pitch, (B, N), minval=16.0, maxval=64.0)
    voiced = jax.random.uniform(k_voiced, (B, N)) > 0.35
    p = jnp.where(voiced, periods, 0.0).astype(jnp.float32)

    e = excitation_generation(p, frame_period=P,
                              unvoiced_region="gauss", key=k_noise)
    e = jax.block_until_ready(e)
    assert e.shape == (B, L) and e.dtype == jnp.float32
    assert bool(jnp.all(jnp.isfinite(e)))

    # sanity check against a pure-JAX transcription of the torch module
    # (tolerant: MXU rounding / scan-order differences can move an occasional
    #  pulse by one sample near a ceil() boundary).
    noise = jax.random.normal(k_noise, (B, L), dtype=jnp.float32)
    e_ref = _reference(p, P, noise, "gauss")
    mismatch = float(jnp.mean((jnp.abs(e - e_ref) > 5e-2).astype(jnp.float32)))
    assert mismatch < 0.02, f"mismatch fraction too high: {mismatch}"
    print("KERNEL_OK")
</pallas_src>

<mosaic_0001>
module attributes {stable_mosaic.version = 11 : i64} {
  func.func @_excite_kernel(%arg0: i32, %arg1: memref<8x16xf32, #tpu.memory_space<vmem>>, %arg2: memref<16x128xf32, #tpu.memory_space<vmem>>, %arg3: memref<1x128xf32, #tpu.memory_space<vmem>>, %arg4: memref<8x128xf32, #tpu.memory_space<vmem>>, %arg5: memref<8x128xf32, #tpu.memory_space<vmem>>) attributes {dimension_semantics = [#tpu.dimension_semantics<parallel>], iteration_bounds = array<i64: 1>, scalar_prefetch = 0 : i64, scratch_operands = 0 : i64, tpu.core_type = #tpu.core_type<tc>, window_params = [{transform_indices = @transform_0, window_bounds = array<i64: 8, 16>}, {pipeline_mode = #tpu.pipeline_mode<synchronous>, transform_indices = @transform_1, window_bounds = array<i64: 16, 128>}, {pipeline_mode = #tpu.pipeline_mode<synchronous>, transform_indices = @transform_2, window_bounds = array<i64: 1, 128>}, {transform_indices = @transform_3, window_bounds = array<i64: 8, 128>}, {transform_indices = @transform_4, window_bounds = array<i64: 8, 128>}]} {
    %c0 = arith.constant 0 : index
    %c0_0 = arith.constant 0 : index
    %0 = vector.load %arg1[%c0, %c0_0] : memref<8x16xf32, #tpu.memory_space<vmem>>, vector<8x16xf32>
    %c0_1 = arith.constant 0 : index
    %c0_2 = arith.constant 0 : index
    %1 = vector.load %arg2[%c0_1, %c0_2] : memref<16x128xf32, #tpu.memory_space<vmem>>, vector<16x128xf32>
    %c0_3 = arith.constant 0 : index
    %c0_4 = arith.constant 0 : index
    %2 = vector.load %arg3[%c0_3, %c0_4] : memref<1x128xf32, #tpu.memory_space<vmem>>, vector<1x128xf32>
    %cst = arith.constant 1.000000e+00 : f32
    %3 = vector.broadcast %cst : f32 to vector<1x128xf32>
    %4 = arith.subf %3, %2 : vector<1x128xf32>
    %cst_5 = arith.constant dense<0.000000e+00> : vector<8x128xf32>
    %5 = tpu.matmul %0, %1, %cst_5 {dimension_numbers = #tpu.dot_dimension_numbers<[1], [0], [0], [1], [0, 0, 1, 1], [], []>} : vector<8x16xf32>, vector<16x128xf32>, vector<8x128xf32> -> vector<8x128xf32>
    %cst_6 = arith.constant 1.000000e+00 : f32
    %6 = vector.broadcast %cst_6 : f32 to vector<8x128xf32>
    %7 = arith.cmpf oge, %5, %6 : vector<8x128xf32>
    %8 = arith.extui %7 : vector<8x128xi1> to vector<8x128xi32>
    %9 = arith.sitofp %8 : vector<8x128xi32> to vector<8x128xf32>
    %10 = tpu.iota {dimensions = array<i32: 1>} : vector<1x128xi32>
    %c120_i32 = arith.constant 120 : i32
    %11 = tpu.dynamic_rotate %5 by %c120_i32 dim 1 : vector<8x128xf32>, i32 -> vector<8x128xf32>
    %c120_i32_7 = arith.constant 120 : i32
    %12 = vector.broadcast %c120_i32_7 : i32 to vector<1x128xi32>
    %13 = arith.cmpi sge, %10, %12 : vector<1x128xi32>
    %14 = vector.shape_cast %13 : vector<1x128xi1> to vector<1x128xi1>
    %15 = vector.broadcast %14 : vector<1x128xi1> to vector<8x128xi1>
    %16 = arith.select %15, %5, %11 : vector<8x128xi1>, vector<8x128xf32>
    %cst_8 = arith.constant 0.000000e+00 : f32
    %17 = vector.broadcast %cst_8 : f32 to vector<8x128xf32>
    %18 = arith.cmpf ole, %16, %17 : vector<8x128xf32>
    %19 = arith.andi %7, %18 : vector<8x128xi1>
    %20 = arith.select %19, %5, %16 : vector<8x128xi1>, vector<8x128xf32>
    %21 = vector.broadcast %4 : vector<1x128xf32> to vector<8x128xf32>
    %22 = arith.mulf %5, %21 : vector<8x128xf32>
    %23 = vector.broadcast %2 : vector<1x128xf32> to vector<8x128xf32>
    %24 = arith.mulf %20, %23 : vector<8x128xf32>
    %25 = arith.addf %22, %24 : vector<8x128xf32>
    %26 = arith.mulf %25, %9 : vector<8x128xf32>
    %cst_9 = arith.constant 0.000000e+00 : f32
    %27 = vector.broadcast %cst_9 : f32 to vector<8x128xf32>
    %28 = arith.cmpf one, %26, %27 : vector<8x128xf32>
    %cst_10 = arith.constant 1.000000e+00 : f32
    %29 = vector.broadcast %cst_10 : f32 to vector<8x128xf32>
    %30 = arith.divf %29, %26 : vector<8x128xf32>
    %cst_11 = arith.constant 0.000000e+00 : f32
    %31 = vector.broadcast %cst_11 : f32 to vector<8x128xf32>
    %32 = arith.select %28, %30, %31 : vector<8x128xi1>, vector<8x128xf32>
    %c1_i32 = arith.constant 1 : i32
    %33 = vector.broadcast %c1_i32 : i32 to vector<1x128xi32>
    %34 = arith.cmpi sge, %10, %33 : vector<1x128xi32>
    %c2_i32 = arith.constant 2 : i32
    %35 = vector.broadcast %c2_i32 : i32 to vector<1x128xi32>
    %36 = arith.cmpi sge, %10, %35 : vector<1x128xi32>
    %c4_i32 = arith.constant 4 : i32
    %37 = vector.broadcast %c4_i32 : i32 to vector<1x128xi32>
    %38 = arith.cmpi sge, %10, %37 : vector<1x128xi32>
    %c8_i32 = arith.constant 8 : i32
    %39 = vector.broadcast %c8_i32 : i32 to vector<1x128xi32>
    %40 = arith.cmpi sge, %10, %39 : vector<1x128xi32>
    %c16_i32 = arith.constant 16 : i32
    %41 = vector.broadcast %c16_i32 : i32 to vector<1x128xi32>
    %42 = arith.cmpi sge, %10, %41 : vector<1x128xi32>
    %c32_i32 = arith.constant 32 : i32
    %43 = vector.broadcast %c32_i32 : i32 to vector<1x128xi32>
    %44 = arith.cmpi sge, %10, %43 : vector<1x128xi32>
    %c64_i32 = arith.constant 64 : i32
    %45 = vector.broadcast %c64_i32 : i32 to vector<1x128xi32>
    %46 = arith.cmpi sge, %10, %45 : vector<1x128xi32>
    %c1_i32_12 = arith.constant 1 : i32
    %47 = tpu.dynamic_rotate %32 by %c1_i32_12 dim 1 : vector<8x128xf32>, i32 -> vector<8x128xf32>
    %cst_13 = arith.constant 0.000000e+00 : f32
    %48 = vector.shape_cast %34 : vector<1x128xi1> to vector<1x128xi1>
    %49 = vector.broadcast %48 : vector<1x128xi1> to vector<8x128xi1>
    %50 = vector.broadcast %cst_13 : f32 to vector<8x128xf32>
    %51 = arith.select %49, %47, %50 : vector<8x128xi1>, vector<8x128xf32>
    %52 = arith.addf %32, %51 : vector<8x128xf32>
    %c2_i32_14 = arith.constant 2 : i32
    %53 = tpu.dynamic_rotate %52 by %c2_i32_14 dim 1 : vector<8x128xf32>, i32 -> vector<8x128xf32>
    %cst_15 = arith.constant 0.000000e+00 : f32
    %54 = vector.shape_cast %36 : vector<1x128xi1> to vector<1x128xi1>
    %55 = vector.broadcast %54 : vector<1x128xi1> to vector<8x128xi1>
    %56 = vector.broadcast %cst_15 : f32 to vector<8x128xf32>
    %57 = arith.select %55, %53, %56 : vector<8x128xi1>, vector<8x128xf32>
    %58 = arith.addf %52, %57 : vector<8x128xf32>
    %c4_i32_16 = arith.constant 4 : i32
    %59 = tpu.dynamic_rotate %58 by %c4_i32_16 dim 1 : vector<8x128xf32>, i32 -> vector<8x128xf32>
    %cst_17 = arith.constant 0.000000e+00 : f32
    %60 = vector.shape_cast %38 : vector<1x128xi1> to vector<1x128xi1>
    %61 = vector.broadcast %60 : vector<1x128xi1> to vector<8x128xi1>
    %62 = vector.broadcast %cst_17 : f32 to vector<8x128xf32>
    %63 = arith.select %61, %59, %62 : vector<8x128xi1>, vector<8x128xf32>
    %64 = arith.addf %58, %63 : vector<8x128xf32>
    %c8_i32_18 = arith.constant 8 : i32
    %65 = tpu.dynamic_rotate %64 by %c8_i32_18 dim 1 : vector<8x128xf32>, i32 -> vector<8x128xf32>
    %cst_19 = arith.constant 0.000000e+00 : f32
    %66 = vector.shape_cast %40 : vector<1x128xi1> to vector<1x128xi1>
    %67 = vector.broadcast %66 : vector<1x128xi1> to vector<8x128xi1>
    %68 = vector.broadcast %cst_19 : f32 to vector<8x128xf32>
    %69 = arith.select %67, %65, %68 : vector<8x128xi1>, vector<8x128xf32>
    %70 = arith.addf %64, %69 : vector<8x128xf32>
    %c16_i32_20 = arith.constant 16 : i32
    %71 = tpu.dynamic_rotate %70 by %c16_i32_20 dim 1 : vector<8x128xf32>, i32 -> vector<8x128xf32>
    %cst_21 = arith.constant 0.000000e+00 : f32
    %72 = vector.shape_cast %42 : vector<1x128xi1> to vector<1x128xi1>
    %73 = vector.broadcast %72 : vector<1x128xi1> to vector<8x128xi1>
    %74 = vector.broadcast %cst_21 : f32 to vector<8x128xf32>
    %75 = arith.select %73, %71, %74 : vector<8x128xi1>, vector<8x128xf32>
    %76 = arith.addf %70, %75 : vector<8x128xf32>
    %c32_i32_22 = arith.constant 32 : i32
    %77 = tpu.dynamic_rotate %76 by %c32_i32_22 dim 1 : vector<8x128xf32>, i32 -> vector<8x128xf32>
    %cst_23 = arith.constant 0.000000e+00 : f32
    %78 = vector.shape_cast %44 : vector<1x128xi1> to vector<1x128xi1>
    %79 = vector.broadcast %78 : vector<1x128xi1> to vector<8x128xi1>
    %80 = vector.broadcast %cst_23 : f32 to vector<8x128xf32>
    %81 = arith.select %79, %77, %80 : vector<8x128xi1>, vector<8x128xf32>
    %82 = arith.addf %76, %81 : vector<8x128xf32>
    %c64_i32_24 = arith.constant 64 : i32
    %83 = tpu.dynamic_rotate %82 by %c64_i32_24 dim 1 : vector<8x128xf32>, i32 -> vector<8x128xf32>
    %cst_25 = arith.constant 0.000000e+00 : f32
    %84 = vector.shape_cast %46 : vector<1x128xi1> to vector<1x128xi1>
    %85 = vector.broadcast %84 : vector<1x128xi1> to vector<8x128xi1>
    %86 = vector.broadcast %cst_25 : f32 to vector<8x128xf32>
    %87 = arith.select %85, %83, %86 : vector<8x128xi1>, vector<8x128xf32>
    %88 = arith.addf %82, %87 : vector<8x128xf32>
    %cst_26 = arith.constant 1.000000e+00 : f32
    %89 = vector.broadcast %cst_26 : f32 to vector<8x128xf32>
    %90 = arith.subf %89, %9 : vector<8x128xf32>
    %91 = arith.mulf %88, %90 : vector<8x128xf32>
    %c1_i32_27 = arith.constant 1 : i32
    %92 = tpu.dynamic_rotate %91 by %c1_i32_27 dim 1 : vector<8x128xf32>, i32 -> vector<8x128xf32>
    %93 = arith.maximumf %91, %92 : vector<8x128xf32>
    %94 = vector.shape_cast %34 : vector<1x128xi1> to vector<1x128xi1>
    %95 = vector.broadcast %94 : vector<1x128xi1> to vector<8x128xi1>
    %96 = arith.select %95, %93, %91 : vector<8x128xi1>, vector<8x128xf32>
    %c2_i32_28 = arith.constant 2 : i32
    %97 = tpu.dynamic_rotate %96 by %c2_i32_28 dim 1 : vector<8x128xf32>, i32 -> vector<8x128xf32>
    %98 = arith.maximumf %96, %97 : vector<8x128xf32>
    %99 = vector.shape_cast %36 : vector<1x128xi1> to vector<1x128xi1>
    %100 = vector.broadcast %99 : vector<1x128xi1> to vector<8x128xi1>
    %101 = arith.select %100, %98, %96 : vector<8x128xi1>, vector<8x128xf32>
    %c4_i32_29 = arith.constant 4 : i32
    %102 = tpu.dynamic_rotate %101 by %c4_i32_29 dim 1 : vector<8x128xf32>, i32 -> vector<8x128xf32>
    %103 = arith.maximumf %101, %102 : vector<8x128xf32>
    %104 = vector.shape_cast %38 : vector<1x128xi1> to vector<1x128xi1>
    %105 = vector.broadcast %104 : vector<1x128xi1> to vector<8x128xi1>
    %106 = arith.select %105, %103, %101 : vector<8x128xi1>, vector<8x128xf32>
    %c8_i32_30 = arith.constant 8 : i32
    %107 = tpu.dynamic_rotate %106 by %c8_i32_30 dim 1 : vector<8x128xf32>, i32 -> vector<8x128xf32>
    %108 = arith.maximumf %106, %107 : vector<8x128xf32>
    %109 = vector.shape_cast %40 : vector<1x128xi1> to vector<1x128xi1>
    %110 = vector.broadcast %109 : vector<1x128xi1> to vector<8x128xi1>
    %111 = arith.select %110, %108, %106 : vector<8x128xi1>, vector<8x128xf32>
    %c16_i32_31 = arith.constant 16 : i32
    %112 = tpu.dynamic_rotate %111 by %c16_i32_31 dim 1 : vector<8x128xf32>, i32 -> vector<8x128xf32>
    %113 = arith.maximumf %111, %112 : vector<8x128xf32>
    %114 = vector.shape_cast %42 : vector<1x128xi1> to vector<1x128xi1>
    %115 = vector.broadcast %114 : vector<1x128xi1> to vector<8x128xi1>
    %116 = arith.select %115, %113, %111 : vector<8x128xi1>, vector<8x128xf32>
    %c32_i32_32 = arith.constant 32 : i32
    %117 = tpu.dynamic_rotate %116 by %c32_i32_32 dim 1 : vector<8x128xf32>, i32 -> vector<8x128xf32>
    %118 = arith.maximumf %116, %117 : vector<8x128xf32>
    %119 = vector.shape_cast %44 : vector<1x128xi1> to vector<1x128xi1>
    %120 = vector.broadcast %119 : vector<1x128xi1> to vector<8x128xi1>
    %121 = arith.select %120, %118, %116 : vector<8x128xi1>, vector<8x128xf32>
    %c64_i32_33 = arith.constant 64 : i32
    %122 = tpu.dynamic_rotate %121 by %c64_i32_33 dim 1 : vector<8x128xf32>, i32 -> vector<8x128xf32>
    %123 = arith.maximumf %121, %122 : vector<8x128xf32>
    %124 = vector.shape_cast %46 : vector<1x128xi1> to vector<1x128xi1>
    %125 = vector.broadcast %124 : vector<1x128xi1> to vector<8x128xi1>
    %126 = arith.select %125, %123, %121 : vector<8x128xi1>, vector<8x128xf32>
    %127 = arith.subf %88, %126 : vector<8x128xf32>
    %cst_34 = arith.constant 9.99999993E-9 : f32
    %128 = vector.broadcast %cst_34 : f32 to vector<8x128xf32>
    %129 = arith.subf %127, %128 : vector<8x128xf32>
    %130 = math.ceil %129 : vector<8x128xf32>
    %c1_i32_35 = arith.constant 1 : i32
    %131 = tpu.dynamic_rotate %130 by %c1_i32_35 dim 1 : vector<8x128xf32>, i32 -> vector<8x128xf32>
    %cst_36 = arith.constant 0.000000e+00 : f32
    %132 = vector.shape_cast %34 : vector<1x128xi1> to vector<1x128xi1>
    %133 = vector.broadcast %132 : vector<1x128xi1> to vector<8x128xi1>
    %134 = vector.broadcast %cst_36 : f32 to vector<8x128xf32>
    %135 = arith.select %133, %131, %134 : vector<8x128xi1>, vector<8x128xf32>
    %136 = arith.subf %130, %135 : vector<8x128xf32>
    %cst_37 = arith.constant 1.000000e+00 : f32
    %137 = vector.broadcast %cst_37 : f32 to vector<8x128xf32>
    %138 = arith.cmpf oge, %136, %137 : vector<8x128xf32>
    %139 = math.sqrt %26 : vector<8x128xf32>
    %cst_38 = arith.constant 0.000000e+00 : f32
    %140 = vector.broadcast %cst_38 : f32 to vector<8x128xf32>
    %141 = arith.select %138, %139, %140 : vector<8x128xi1>, vector<8x128xf32>
    %c0_39 = arith.constant 0 : index
    %c0_40 = arith.constant 0 : index
    %142 = vector.load %arg4[%c0_39, %c0_40] : memref<8x128xf32, #tpu.memory_space<vmem>>, vector<8x128xf32>
    %143 = arith.select %7, %141, %142 : vector<8x128xi1>, vector<8x128xf32>
    %c0_41 = arith.constant 0 : index
    %c0_42 = arith.constant 0 : index
    %144 = vector.load %arg5[%c0_41, %c0_42] : memref<8x128xf32, #tpu.memory_space<vmem>>, vector<8x128xf32>
    tpu.vector_store %arg5[%c0_41, %c0_42], %143 {strides = array<i32>} : memref<8x128xf32, #tpu.memory_space<vmem>>, vector<8x128xf32>,
    return
  }
  func.func @transform_0(%arg0: i32) -> (i32, i32) {
    %c0_i32 = arith.constant 0 : i32
    %c0_i32_0 = arith.constant 0 : i32
    return %arg0, %c0_i32 : i32, i32
  }
  func.func @transform_1(%arg0: i32) -> (i32, i32) {
    %c0_i32 = arith.constant 0 : i32
    %c0_i32_0 = arith.constant 0 : i32
    %c0_i32_1 = arith.constant 0 : i32
    return %c0_i32, %c0_i32_0 : i32, i32
  }
  func.func @transform_2(%arg0: i32) -> (i32, i32) {
    %c0_i32 = arith.constant 0 : i32
    %c0_i32_0 = arith.constant 0 : i32
    %c0_i32_1 = arith.constant 0 : i32
    return %c0_i32, %c0_i32_0 : i32, i32
  }
  func.func @transform_3(%arg0: i32) -> (i32, i32) {
    %c0_i32 = arith.constant 0 : i32
    %c0_i32_0 = arith.constant 0 : i32
    return %arg0, %c0_i32 : i32, i32
  }
  func.func @transform_4(%arg0: i32) -> (i32, i32) {
    %c0_i32 = arith.constant 0 : i32
    %c0_i32_0 = arith.constant 0 : i32
    return %arg0, %c0_i32 : i32, i32
  }
}

</mosaic_0001>

<llo_original>
// kernel: tpu_custom_call.1
$region0: #{tpu_custom_call.1}
  #allocation0 [shape = 'u32[]', space=smem, size = 0x4, offset = 0x4, fixed_abs, tag = 'smem constant byte address 0x4 - core index']
  #allocation1 [shape = 'u32[72,128]{1,0:T(1,128)}', space=vmem, size = 0x9000, scoped, tag = 'internal scratch']
  %s0 = inlined_call_operand.hbm [shape: f32[8,16], index: 0, kind: input, shape index: {}]
  %s1 = inlined_call_operand.hbm [shape: f32[16,128], index: 1, kind: input, shape index: {}]
  %s2 = inlined_call_operand.vmem [shape: f32[1,128], index: 2, kind: input, shape index: {}]
  %s3 = inlined_call_operand.hbm [shape: f32[8,128], index: 3, kind: input, shape index: {}]
  %s4 = inlined_call_operand.hbm [shape: f32[8,128], index: 4, kind: output, shape index: {}]
  %s5 = sld [smem:[#allocation0]]
  $region38: #{tpu_custom_call.1} parent=0
    _
  %s7 = ssub.s32 1, %s5
  %s8 = scalar_select 0, %s7, %s5
  $region1: #{tpu_custom_call.1} parent=0
    #allocation2 [shape = 'u8[4096]{0}', space=vmem, size = 0x1000, scoped, tag = 'input window, operand 0, single buffered']
    #allocation3 [shape = 's32[1]{0}', space=sflag, size = 0x4, scoped, tag = 'scoped memory for tpu_custom_call.1']
    #allocation4 [shape = 's32[1]{0}', space=sflag, size = 0x4, scoped, tag = 'scoped memory for tpu_custom_call.1']
    #allocation5 [shape = 'u8[8192]{0}', space=vmem, size = 0x2000, scoped, tag = 'input window, operand 1, single buffered']
    #allocation6 [shape = 's32[1]{0}', space=sflag, size = 0x4, scoped, tag = 'scoped memory for tpu_custom_call.1']
    #allocation7 [shape = 'u8[4096]{0}', space=vmem, size = 0x1000, scoped, tag = 'input window, operand 3, single buffered']
    #allocation8 [shape = 'u8[4096]{0}', space=vmem, size = 0x1000, scoped, tag = 'output window, operand 0, single buffered']
    %9 = vsyncpa [#allocation3], 0
    %10 = vsyncpa [#allocation6], 0
    %11 = vsyncpa [#allocation4], 0
    // Predicated region
    $region2: #{tpu_custom_call.1} parent=1 // pred_check
      _
    $region3: #{tpu_custom_call.1} parent=1 // pred_check_branch
      %13 = sbr.rel (0) target = $region5
    $region4: #{tpu_custom_call.1} parent=1 // pred_region
      %15 = vsyncadd [#allocation3], 0
      %s17 = sshll.u32 %s0, 4
      %s18 = int_to_ptr.hbm [resolvable:$true] %s17
      %s19 = sshll.u32 [#allocation2], 4
      %s20 = int_to_ptr.vmem [resolvable:$true] %s19
      %22 = dma.hbm_to_vmem [thread:$0]  %s18, 128, %s20, [#allocation3]
    $region5: #{tpu_custom_call.1} parent=1 // pred_fallthru
      _
    // Predicated region
    $region6: #{tpu_custom_call.1} parent=1 // pred_check
      _
    $region7: #{tpu_custom_call.1} parent=1 // pred_check_branch
      %24 = sbr.rel (0) target = $region9
    $region8: #{tpu_custom_call.1} parent=1 // pred_region
      %26 = vsyncadd [#allocation6], 0
      %s27 = sshll.u32 %s1, 4
      %s28 = int_to_ptr.hbm [resolvable:$true] %s27
      %s29 = sshll.u32 [#allocation5], 4
      %s30 = int_to_ptr.vmem [resolvable:$true] %s29
      %35 = dma.hbm_to_vmem [thread:$0]  %s28, 256, %s30, [#allocation6], 128, 128, 8
    $region9: #{tpu_custom_call.1} parent=1 // pred_fallthru
      _
    // Predicated region
    $region10: #{tpu_custom_call.1} parent=1 // pred_check
      _
    $region11: #{tpu_custom_call.1} parent=1 // pred_check_branch
      %37 = sbr.rel (0) target = $region13
    $region12: #{tpu_custom_call.1} parent=1 // pred_region
      _
    $region13: #{tpu_custom_call.1} parent=1 // pred_fallthru
      _
    // Predicated region
    $region14: #{tpu_custom_call.1} parent=1 // pred_check
      _
    $region15: #{tpu_custom_call.1} parent=1 // pred_check_branch
      %39 = sbr.rel (0) target = $region17
    $region16: #{tpu_custom_call.1} parent=1 // pred_region
      %41 = vsyncadd [#allocation6], 0
      %s43 = sshll.u32 %s3, 4
      %s44 = int_to_ptr.hbm [resolvable:$true] %s43
      %s45 = sshll.u32 [#allocation7], 4
      %s46 = int_to_ptr.vmem [resolvable:$true] %s45
      %48 = dma.hbm_to_vmem [thread:$0]  %s44, 128, %s46, [#allocation6]
    $region17: #{tpu_custom_call.1} parent=1 // pred_fallthru
      _
    // Predicated region
    $region18: #{tpu_custom_call.1} parent=1 // pred_check
      _
    $region19: #{tpu_custom_call.1} parent=1 // pred_check_branch
      %50 = sbr.rel (0) target = $region21
    $region20: #{tpu_custom_call.1} parent=1 // pred_region
      %52 = dma.done [#allocation3], 128
    $region21: #{tpu_custom_call.1} parent=1 // pred_fallthru
      _
    // Predicated region
    $region22: #{tpu_custom_call.1} parent=1 // pred_check
      _
    $region23: #{tpu_custom_call.1} parent=1 // pred_check_branch
      %54 = sbr.rel (0) target = $region25
    $region24: #{tpu_custom_call.1} parent=1 // pred_region
      %56 = dma.done [#allocation6], 256
    $region25: #{tpu_custom_call.1} parent=1 // pred_fallthru
      _
    // Predicated region
    $region26: #{tpu_custom_call.1} parent=1 // pred_check
      _
    $region27: #{tpu_custom_call.1} parent=1 // pred_check_branch
      %58 = sbr.rel (0) target = $region29
    $region28: #{tpu_custom_call.1} parent=1 // pred_region
      %60 = dma.done [#allocation6], 128
    $region29: #{tpu_custom_call.1} parent=1 // pred_fallthru
      _
    %v61 = vld [vmem:[#allocation2] sm:$0xff]
    %v62 = vld [vmem:[#allocation5] sm:$0xff]
    %v63 = vld [vmem:[#allocation5 + $0x8] sm:$0xff]
    %v64 = vld [vmem:[%s2] sm:$0x1]
    %v65 = vsub.f32 1.0, %v64
    %vm66 = vcmask 130048
    %v68 = vsel %vm66, %v61, 0
    %70 = vmatpush.msra.mxu0 0.0
    %71 = vmatpush.msra.mxu0 0.0
    %72 = vmatpush.msra.mxu0 0.0
    %73 = vmatpush.msra.mxu0 0.0
    %74 = vmatpush.msra.mxu0 0.0
    %75 = vmatpush.msra.mxu0 0.0
    %76 = vmatpush.msra.mxu0 0.0
    %77 = vmatpush.msra.mxu0 0.0
    %78 = vmatpush.msra.mxu0 0.0
    %79 = vmatpush.msra.mxu0 0.0
    %80 = vmatpush.msra.mxu0 0.0
    %81 = vmatpush.msra.mxu0 0.0
    %82 = vmatpush.msra.mxu0 0.0
    %83 = vmatpush.msra.mxu0 0.0
    %84 = vmatpush.msra.mxu0 %v63
    %85 = vmatpush.msra.mxu0 %v62
    %86 = vmatmul.f32.gmra.mxu0 %v68
    %v87 = vpop.f32.mrf.mxu0
    %v88 = vadd.f32 0.0, %v87
    %89 = vdwg.mxu0
    %vm90 = vcmp.ge.f32.partialorder %v88, 1.0
    %v91 = vsel %vm90, 1, 0
    %v92 = vcvt.s32.f32 %v91
    %v93 = vlaneseq
    %v94 = vand.u32 %v93, 127
    %95 = vrot.lane.b32.xlu0 %v88, 120
    %v96 = vpop.permute.xlu0 %95
    %vm97 = vcmp.ge.s32.totalorder %v94, 120
    %v98 = vsel %vm97, 1, 0
    %vm99 = vcmp.eq.s32.totalorder %v98, 1
    %v100 = vsel %vm99, %v88, %v96
    %vm101 = vcmp.le.f32.partialorder %v100, 0.0
    %vm102 = vmand %vm90, %vm101
    %v103 = vsel %vm102, %v88, %v100
    %v105 = vperm.slane %v65, 0
    %v107 = vmul.f32 %v88, %v105
    %v109 = vperm.slane %v64, 0
    %v111 = vmul.f32 %v103, %v109
    %v112 = vadd.f32 %v107, %v111
    %v113 = vmul.f32 %v112, %v92
    %vm114 = vcmp.ne.f32.partialorder %v113, 0.0
    %v115 = vrcp.pop %v113
    %v116 = vmul.f32 %v113, %v115
    %v117 = vsub.f32 1.0, %v116
    %v118 = vmul.f32 %v115, %v117
    %v119 = vadd.f32 %v115, %v118
    %vm120 = vweird.f32 %v113
    %vm121 = vweird.f32 %v115
    %vm122 = vmor %vm120, %vm121
    %v123 = vsel %vm122, %v115, %v119
    %v124 = vand.u32 2147483647, %v113
    %vm125 = vcmp.eq.f32.partialorder %v124, 8.507059e+37
    %v126 = vand.u32 %v113, 2147483648
    %v127 = vor.u32 1.1754944e-38, %v126
    %v128 = vsel %vm125, %v127, %v123
    %v129 = vmul.f32 1.0, %v128
    %v130 = vsel %vm114, %v129, 0.0
    %vm131 = vcmp.ge.s32.totalorder %v94, 1
    %vm132 = vcmp.ge.s32.totalorder %v94, 2
    %vm133 = vcmp.ge.s32.totalorder %v94, 4
    %vm134 = vcmp.ge.s32.totalorder %v94, 8
    %vm135 = vcmp.ge.s32.totalorder %v94, 16
    %vm136 = vcmp.ge.s32.totalorder %v94, 32
    %vm137 = vcmp.ge.s32.totalorder %v94, 64
    %138 = vrot.lane.b32.xlu0 %v130, 1
    %v139 = vpop.permute.xlu0 %138
    %v140 = vsel %vm131, 1, 0
    %vm141 = vcmp.eq.s32.totalorder %v140, 1
    %v142 = vsel %vm141, %v139, 0.0
    %v143 = vadd.f32 %v130, %v142
    %144 = vrot.lane.b32.xlu0 %v143, 2
    %v145 = vpop.permute.xlu0 %144
    %v146 = vsel %vm132, 1, 0
    %vm147 = vcmp.eq.s32.totalorder %v146, 1
    %v148 = vsel %vm147, %v145, 0.0
    %v149 = vadd.f32 %v143, %v148
    %150 = vrot.lane.b32.xlu0 %v149, 4
    %v151 = vpop.permute.xlu0 %150
    %v152 = vsel %vm133, 1, 0
    %vm153 = vcmp.eq.s32.totalorder %v152, 1
    %v154 = vsel %vm153, %v151, 0.0
    %v155 = vadd.f32 %v149, %v154
    %156 = vrot.lane.b32.xlu0 %v155, 8
    %v157 = vpop.permute.xlu0 %156
    %v158 = vsel %vm134, 1, 0
    %vm159 = vcmp.eq.s32.totalorder %v158, 1
    %v160 = vsel %vm159, %v157, 0.0
    %v161 = vadd.f32 %v155, %v160
    %162 = vrot.lane.b32.xlu0 %v161, 16
    %v163 = vpop.permute.xlu0 %162
    %v164 = vsel %vm135, 1, 0
    %vm165 = vcmp.eq.s32.totalorder %v164, 1
    %v166 = vsel %vm165, %v163, 0.0
    %v167 = vadd.f32 %v161, %v166
    %168 = vrot.lane.b32.xlu0 %v167, 32
    %v169 = vpop.permute.xlu0 %168
    %v170 = vsel %vm136, 1, 0
    %vm171 = vcmp.eq.s32.totalorder %v170, 1
    %v172 = vsel %vm171, %v169, 0.0
    %v173 = vadd.f32 %v167, %v172
    %174 = vrot.lane.b32.xlu0 %v173, 64
    %v175 = vpop.permute.xlu0 %174
    %v176 = vsel %vm137, 1, 0
    %vm177 = vcmp.eq.s32.totalorder %v176, 1
    %v178 = vsel %vm177, %v175, 0.0
    %v179 = vadd.f32 %v173, %v178
    %v180 = vsub.f32 1.0, %v92
    %v181 = vmul.f32 %v179, %v180
    %182 = vrot.lane.b32.xlu0 %v181, 1
    %v183 = vpop.permute.xlu0 %182
    %v184 = vmax.f32 %v181, %v183
    %v185 = vsel %vm141, %v184, %v181
    %186 = vrot.lane.b32.xlu0 %v185, 2
    %v187 = vpop.permute.xlu0 %186
    %v188 = vmax.f32 %v185, %v187
    %v189 = vsel %vm147, %v188, %v185
    %190 = vrot.lane.b32.xlu0 %v189, 4
    %v191 = vpop.permute.xlu0 %190
    %v192 = vmax.f32 %v189, %v191
    %v193 = vsel %vm153, %v192, %v189
    %194 = vrot.lane.b32.xlu0 %v193, 8
    %v195 = vpop.permute.xlu0 %194
    %v196 = vmax.f32 %v193, %v195
    %v197 = vsel %vm159, %v196, %v193
    %198 = vrot.lane.b32.xlu0 %v197, 16
    %v199 = vpop.permute.xlu0 %198
    %v200 = vmax.f32 %v197, %v199
    %v201 = vsel %vm165, %v200, %v197
    %202 = vrot.lane.b32.xlu0 %v201, 32
    %v203 = vpop.permute.xlu0 %202
    %v204 = vmax.f32 %v201, %v203
    %v205 = vsel %vm171, %v204, %v201
    %206 = vrot.lane.b32.xlu0 %v205, 64
    %v207 = vpop.permute.xlu0 %206
    %v208 = vmax.f32 %v205, %v207
    %v209 = vsel %vm177, %v208, %v205
    %v210 = vsub.f32 %v179, %v209
    %v211 = vsub.f32 %v210, 1e-08
    %v212 = vceil.f32 %v211
    %213 = vrot.lane.b32.xlu0 %v212, 1
    %v214 = vpop.permute.xlu0 %213
    %v215 = vsel %vm141, %v214, 0.0
    %v216 = vsub.f32 %v212, %v215
    %vm217 = vcmp.ge.f32.partialorder %v216, 1.0
    %v218 = vrsqrt.pop %v113
    %v219 = vmul.f32 %v218, %v113
    %v220 = vmul.f32 %v219, %v218
    %v221 = vmul.f32 0.5, %v220
    %v222 = vsub.f32 1.5, %v221
    %v223 = vmul.f32 %v218, %v222
    %v224 = vmul.f32 %v113, %v223
    %vm225 = vcmp.eq.f32.partialorder %v113, inf
    %v226 = vsel %vm225, %v113, %v224
    %vm227 = vcmp.eq.f32.partialorder %v113, 0.0
    %v228 = vand.u32 %v113, 2147483648
    %v229 = vsel %vm227, %v228, %v226
    %v230 = vsel %vm217, %v229, 0.0
    %v231 = vld [vmem:[#allocation7] sm:$0xff]
    %v232 = vsel %vm90, %v230, %v231
    %233 = vst [vmem:[#allocation8] sm:$0xff] %v232
    // Predicated region
    $region30: #{tpu_custom_call.1} parent=1 // pred_check
      _
    $region31: #{tpu_custom_call.1} parent=1 // pred_check_branch
      %235 = sbr.rel (0) target = $region33
    $region32: #{tpu_custom_call.1} parent=1 // pred_region
      %237 = vsyncadd [#allocation4], 0
      %s239 = sshll.u32 [#allocation8], 4
      %s240 = int_to_ptr.vmem [resolvable:$true] %s239
      %s241 = sshll.u32 %s4, 4
      %s242 = int_to_ptr.hbm [resolvable:$true] %s241
      %244 = dma.vmem_to_hbm [thread:$0]  %s240, 128, %s242, [#allocation4]
    $region33: #{tpu_custom_call.1} parent=1 // pred_fallthru
      _
    // Predicated region
    $region34: #{tpu_custom_call.1} parent=1 // pred_check
      _
    $region35: #{tpu_custom_call.1} parent=1 // pred_check_branch
      %246 = sbr.rel (0) target = $region37
    $region36: #{tpu_custom_call.1} parent=1 // pred_region
      %248 = dma.done [#allocation4], 128
    $region37: #{tpu_custom_call.1} parent=1 // pred_fallthru
      _
    %249 = vsyncpa [#allocation3], 1
    %250 = vsyncpa [#allocation6], 1
    %251 = vsyncpa [#allocation4], 1

</llo_original>
